<compile_context>
chip_gen: v5e
topology: v5e:2x2
jax: 0.10.0
libtpu: 0.0.40
codegen_flags: <defaults>
</compile_context>

<pallas_src>
import jax
import jax.numpy as jnp
from jax.experimental import pallas as pl
from jax.experimental.pallas import tpu as pltpu


def _sum_kernel_weighted(w_ref, *refs):
    # w_ref: SMEM (n-1,) float32 effective weights (sigmoid(w)*2)
    # refs:  n VMEM input tiles (tr, cols) followed by the output tile
    x_refs = refs[:-1]
    o_ref = refs[-1]
    acc = x_refs[0][...].astype(jnp.float32)          # leading weight is exactly 1.0
    for i in range(1, len(x_refs)):                    # n is small & static -> unrolled
        acc = acc + x_refs[i][...].astype(jnp.float32) * w_ref[i - 1]
    o_ref[...] = acc.astype(o_ref.dtype)


def _sum_kernel_plain(*refs):
    x_refs = refs[:-1]
    o_ref = refs[-1]
    acc = x_refs[0][...].astype(jnp.float32)
    for i in range(1, len(x_refs)):
        acc = acc + x_refs[i][...].astype(jnp.float32)
    o_ref[...] = acc.astype(o_ref.dtype)


def _vmem_capacity_bytes():
    # Generation-aware VMEM capacity (v5e/v6e: 128 MiB, v7x: 64 MiB); conservative fallback.
    try:
        return int(pltpu.get_tpu_info().vmem_capacity_bytes)
    except Exception:
        return 64 * 1024 * 1024


def pallas_sum(xs, weight=False, w_param=None):
    """Reproduces Sum.forward for a list of n identically-shaped arrays."""
    n = len(xs)
    orig_shape = xs[0].shape
    dtype = xs[0].dtype
    itemsize = jnp.dtype(dtype).itemsize

    if n == 1:
        return xs[0]

    M = 1
    for d in orig_shape:
        M *= int(d)

    w_eff = None
    if weight:
        w_eff = (jax.nn.sigmoid(w_param.astype(jnp.float32)) * 2.0).reshape(-1)

    flats = [x.reshape(-1) for x in xs]

    # 128-aligned main body -> Pallas kernel; <128-element tail -> tiny jnp epilogue.
    M_main = (M // 128) * 128
    tail_len = M - M_main

    main_out = None
    if M_main > 0:
        mains = flats if tail_len == 0 else [f[:M_main] for f in flats]

        # Lane-dense 2D view: (rows, cols), cols a multiple of 128.
        cols = 128
        for c in (1024, 512, 256):
            if M_main % c == 0:
                cols = c
                break
        rows = M_main // cols
        xs2d = [f.reshape(rows, cols) for f in mains]

        # Dtype-native sublane multiple: 8 for 32-bit, 16 for 16-bit, 32 for 8-bit dtypes.
        sublane = max(8, 32 // max(1, itemsize))

        # Double-buffered VMEM budget, reserving room for the f32 accumulator temporaries:
        #   2 * (n inputs + 1 output) * block_bytes + ~2 * f32_block  <=  vmem_budget.
        vmem_cap = _vmem_capacity_bytes()
        vmem_budget = min(vmem_cap // 2, 80 * 1024 * 1024)
        vmem_limit = min((vmem_cap * 3) // 4, 96 * 1024 * 1024)
        acc_factor = max(1, 4 // itemsize)              # f32 temp size relative to a block
        denom = 2 * (n + 1) + 2 * acc_factor
        block_bytes = max(vmem_budget // denom, sublane * cols * itemsize)
        tr_budget = max(sublane, (block_bytes // (cols * itemsize)) // sublane * sublane)

        # Keep >= ~8 grid steps when the data is non-trivial: lets v7x shard the
        # "parallel" axis across both TensorCores and gives all chips pipeline overlap.
        target_steps = 8
        if rows <= sublane:
            tr = rows                                   # block dim equals full array dim
        else:
            tr_for_steps = max(sublane, (rows // target_steps) // sublane * sublane)
            tr = max(sublane, min(tr_budget, tr_for_steps))
        grid = (pl.cdiv(rows, tr),)

        block_spec = pl.BlockSpec((tr, cols), lambda i: (i, 0))
        x_specs = [block_spec] * n

        if weight:
            in_specs = [pl.BlockSpec(memory_space=pltpu.MemorySpace.SMEM)] + x_specs
            kernel = _sum_kernel_weighted
            args = (w_eff, *xs2d)
        else:
            in_specs = x_specs
            kernel = _sum_kernel_plain
            args = tuple(xs2d)

        main_out = pl.pallas_call(
            kernel,
            out_shape=jax.ShapeDtypeStruct((rows, cols), dtype),
            grid_spec=pltpu.PrefetchScalarGridSpec(
                num_scalar_prefetch=0,
                grid=grid,
                in_specs=in_specs,
                out_specs=block_spec,
            ),
            compiler_params=pltpu.CompilerParams(
                dimension_semantics=("parallel",),
                vmem_limit_bytes=vmem_limit,
            ),
        )(*args).reshape(-1)

    if tail_len > 0:
        tails = [f[M_main:] for f in flats]
        acc = tails[0].astype(jnp.float32)
        for i in range(1, n):
            t = tails[i].astype(jnp.float32)
            acc = acc + (t * w_eff[i - 1] if weight else t)
        tail_out = acc.astype(dtype)
        out_flat = tail_out if main_out is None else jnp.concatenate([main_out, tail_out])
    else:
        out_flat = main_out

    return out_flat.reshape(orig_shape)


if __name__ == "__main__":
    key = jax.random.PRNGKey(0)
    n = 3
    B, C, H, W = 2, 4, 16, 16

    keys = jax.random.split(key, n)
    xs = [jax.random.normal(keys[i], (B, C, H, W), jnp.float32) for i in range(n)]

    # Deterministic parameter init, exactly as in the PyTorch __init__:
    # self.w = -torch.arange(1., n) / 2
    w_param = -jnp.arange(1.0, n, dtype=jnp.float32) / 2.0

    # --- unweighted variant ---
    y0 = jax.block_until_ready(pallas_sum(xs, weight=False))
    ref0 = xs[0]
    for i in range(n - 1):
        ref0 = ref0 + xs[i + 1]
    assert jnp.allclose(y0, ref0, atol=1e-6, rtol=1e-6)

    # --- weighted variant ---
    y1 = jax.block_until_ready(pallas_sum(xs, weight=True, w_param=w_param))
    w_ref = jax.nn.sigmoid(w_param) * 2.0
    ref1 = xs[0]
    for i in range(n - 1):
        ref1 = ref1 + xs[i + 1] * w_ref[i]
    assert jnp.allclose(y1, ref1, atol=1e-6, rtol=1e-6)

    # --- awkward (non-128-divisible) shape exercises the aligned-prefix + tail path ---
    keys2 = jax.random.split(jax.random.PRNGKey(1), n)
    xs2 = [jax.random.normal(keys2[i], (2, 3, 7, 5), jnp.float32) for i in range(n)]
    y2 = jax.block_until_ready(pallas_sum(xs2, weight=True, w_param=w_param))
    ref2 = xs2[0]
    for i in range(n - 1):
        ref2 = ref2 + xs2[i + 1] * w_ref[i]
    assert jnp.allclose(y2, ref2, atol=1e-6, rtol=1e-6)

    print("KERNEL_OK")
</pallas_src>

<mosaic_0001>
module attributes {stable_mosaic.version = 11 : i64} {
  func.func @_sum_kernel_plain(%arg0: i32, %arg1: memref<2x1024xf32, #tpu.memory_space<vmem>>, %arg2: memref<2x1024xf32, #tpu.memory_space<vmem>>, %arg3: memref<2x1024xf32, #tpu.memory_space<vmem>>, %arg4: memref<2x1024xf32, #tpu.memory_space<vmem>>) attributes {dimension_semantics = [#tpu.dimension_semantics<parallel>], iteration_bounds = array<i64: 1>, scalar_prefetch = 0 : i64, scratch_operands = 0 : i64, tpu.core_type = #tpu.core_type<tc>, window_params = [{transform_indices = @transform_0, window_bounds = array<i64: 2, 1024>}, {transform_indices = @transform_1, window_bounds = array<i64: 2, 1024>}, {transform_indices = @transform_2, window_bounds = array<i64: 2, 1024>}, {transform_indices = @transform_3, window_bounds = array<i64: 2, 1024>}]} {
    %c0 = arith.constant 0 : index
    %c0_0 = arith.constant 0 : index
    %0 = vector.load %arg1[%c0, %c0_0] : memref<2x1024xf32, #tpu.memory_space<vmem>>, vector<2x1024xf32>
    %c0_1 = arith.constant 0 : index
    %c0_2 = arith.constant 0 : index
    %1 = vector.load %arg2[%c0_1, %c0_2] : memref<2x1024xf32, #tpu.memory_space<vmem>>, vector<2x1024xf32>
    %2 = arith.addf %0, %1 : vector<2x1024xf32>
    %c0_3 = arith.constant 0 : index
    %c0_4 = arith.constant 0 : index
    %3 = vector.load %arg3[%c0_3, %c0_4] : memref<2x1024xf32, #tpu.memory_space<vmem>>, vector<2x1024xf32>
    %4 = arith.addf %2, %3 : vector<2x1024xf32>
    %c0_5 = arith.constant 0 : index
    %c0_6 = arith.constant 0 : index
    %5 = vector.load %arg4[%c0_5, %c0_6] : memref<2x1024xf32, #tpu.memory_space<vmem>>, vector<2x1024xf32>
    tpu.vector_store %arg4[%c0_5, %c0_6], %4 {strides = array<i32>} : memref<2x1024xf32, #tpu.memory_space<vmem>>, vector<2x1024xf32>,
    return
  }
  func.func @transform_0(%arg0: i32) -> (i32, i32) {
    %c0_i32 = arith.constant 0 : i32
    %c0_i32_0 = arith.constant 0 : i32
    return %arg0, %c0_i32 : i32, i32
  }
  func.func @transform_1(%arg0: i32) -> (i32, i32) {
    %c0_i32 = arith.constant 0 : i32
    %c0_i32_0 = arith.constant 0 : i32
    return %arg0, %c0_i32 : i32, i32
  }
  func.func @transform_2(%arg0: i32) -> (i32, i32) {
    %c0_i32 = arith.constant 0 : i32
    %c0_i32_0 = arith.constant 0 : i32
    return %arg0, %c0_i32 : i32, i32
  }
  func.func @transform_3(%arg0: i32) -> (i32, i32) {
    %c0_i32 = arith.constant 0 : i32
    %c0_i32_0 = arith.constant 0 : i32
    return %arg0, %c0_i32 : i32, i32
  }
}

</mosaic_0001>

<llo_original>
// kernel: tpu_custom_call.1
$region0: #{tpu_custom_call.1}
  #allocation0 [shape = 'u32[]', space=smem, size = 0x4, offset = 0x4, fixed_abs, tag = 'smem constant byte address 0x4 - core index']
  #allocation1 [shape = 'u32[72,128]{1,0:T(1,128)}', space=vmem, size = 0x9000, scoped, tag = 'internal scratch']
  %s0 = inlined_call_operand.hbm [shape: f32[2,1024], index: 0, kind: input, shape index: {}]
  %s1 = inlined_call_operand.hbm [shape: f32[2,1024], index: 1, kind: input, shape index: {}]
  %s2 = inlined_call_operand.hbm [shape: f32[2,1024], index: 2, kind: input, shape index: {}]
  %s3 = inlined_call_operand.hbm [shape: f32[2,1024], index: 3, kind: output, shape index: {}]
  %s4 = sld [smem:[#allocation0]]
  $region34: #{tpu_custom_call.1} parent=0
    _
  %s6 = ssub.s32 1, %s4
  %s7 = scalar_select 0, %s6, %s4
  $region1: #{tpu_custom_call.1} parent=0
    #allocation2 [shape = 'u8[8192]{0}', space=vmem, size = 0x2000, scoped, tag = 'input window, operand 0, single buffered']
    #allocation3 [shape = 's32[1]{0}', space=sflag, size = 0x4, scoped, tag = 'scoped memory for tpu_custom_call.1']
    #allocation4 [shape = 's32[1]{0}', space=sflag, size = 0x4, scoped, tag = 'scoped memory for tpu_custom_call.1']
    #allocation5 [shape = 'u8[8192]{0}', space=vmem, size = 0x2000, scoped, tag = 'input window, operand 1, single buffered']
    #allocation6 [shape = 's32[1]{0}', space=sflag, size = 0x4, scoped, tag = 'scoped memory for tpu_custom_call.1']
    #allocation7 [shape = 'u8[8192]{0}', space=vmem, size = 0x2000, scoped, tag = 'input window, operand 2, single buffered']
    #allocation8 [shape = 'u8[8192]{0}', space=vmem, size = 0x2000, scoped, tag = 'output window, operand 0, single buffered']
    %8 = vsyncpa [#allocation3], 0
    %9 = vsyncpa [#allocation6], 0
    %10 = vsyncpa [#allocation4], 0
    // Predicated region
    $region2: #{tpu_custom_call.1} parent=1 // pred_check
      _
    $region3: #{tpu_custom_call.1} parent=1 // pred_check_branch
      %12 = sbr.rel (0) target = $region5
    $region4: #{tpu_custom_call.1} parent=1 // pred_region
      %14 = vsyncadd [#allocation3], 0
      %s16 = sshll.u32 %s0, 4
      %s17 = int_to_ptr.hbm [resolvable:$true] %s16
      %s18 = sshll.u32 [#allocation2], 4
      %s19 = int_to_ptr.vmem [resolvable:$true] %s18
      %21 = dma.hbm_to_vmem [thread:$0]  %s17, 256, %s19, [#allocation3]
    $region5: #{tpu_custom_call.1} parent=1 // pred_fallthru
      _
    // Predicated region
    $region6: #{tpu_custom_call.1} parent=1 // pred_check
      _
    $region7: #{tpu_custom_call.1} parent=1 // pred_check_branch
      %23 = sbr.rel (0) target = $region9
    $region8: #{tpu_custom_call.1} parent=1 // pred_region
      %25 = vsyncadd [#allocation6], 0
      %s27 = sshll.u32 %s1, 4
      %s28 = int_to_ptr.hbm [resolvable:$true] %s27
      %s29 = sshll.u32 [#allocation5], 4
      %s30 = int_to_ptr.vmem [resolvable:$true] %s29
      %32 = dma.hbm_to_vmem [thread:$0]  %s28, 256, %s30, [#allocation6]
    $region9: #{tpu_custom_call.1} parent=1 // pred_fallthru
      _
    // Predicated region
    $region10: #{tpu_custom_call.1} parent=1 // pred_check
      _
    $region11: #{tpu_custom_call.1} parent=1 // pred_check_branch
      %34 = sbr.rel (0) target = $region13
    $region12: #{tpu_custom_call.1} parent=1 // pred_region
      %36 = vsyncadd [#allocation6], 0
      %s38 = sshll.u32 %s2, 4
      %s39 = int_to_ptr.hbm [resolvable:$true] %s38
      %s40 = sshll.u32 [#allocation7], 4
      %s41 = int_to_ptr.vmem [resolvable:$true] %s40
      %43 = dma.hbm_to_vmem [thread:$0]  %s39, 256, %s41, [#allocation6]
    $region13: #{tpu_custom_call.1} parent=1 // pred_fallthru
      _
    // Predicated region
    $region14: #{tpu_custom_call.1} parent=1 // pred_check
      _
    $region15: #{tpu_custom_call.1} parent=1 // pred_check_branch
      %45 = sbr.rel (0) target = $region17
    $region16: #{tpu_custom_call.1} parent=1 // pred_region
      %47 = dma.done [#allocation3], 256
    $region17: #{tpu_custom_call.1} parent=1 // pred_fallthru
      _
    // Predicated region
    $region18: #{tpu_custom_call.1} parent=1 // pred_check
      _
    $region19: #{tpu_custom_call.1} parent=1 // pred_check_branch
      %49 = sbr.rel (0) target = $region21
    $region20: #{tpu_custom_call.1} parent=1 // pred_region
      %51 = dma.done [#allocation6], 256
    $region21: #{tpu_custom_call.1} parent=1 // pred_fallthru
      _
    // Predicated region
    $region22: #{tpu_custom_call.1} parent=1 // pred_check
      _
    $region23: #{tpu_custom_call.1} parent=1 // pred_check_branch
      %53 = sbr.rel (0) target = $region25
    $region24: #{tpu_custom_call.1} parent=1 // pred_region
      %55 = dma.done [#allocation6], 256
    $region25: #{tpu_custom_call.1} parent=1 // pred_fallthru
      _
    %v56 = vld [vmem:[#allocation2] sm:$0xff]
    %v57 = vld [vmem:[#allocation2 + $0x8] sm:$0xff]
    %v58 = vld [vmem:[#allocation5] sm:$0xff]
    %v59 = vld [vmem:[#allocation5 + $0x8] sm:$0xff]
    %v60 = vadd.f32 %v56, %v58
    %v61 = vadd.f32 %v57, %v59
    %v62 = vld [vmem:[#allocation7] sm:$0xff]
    %v63 = vld [vmem:[#allocation7 + $0x8] sm:$0xff]
    %v64 = vadd.f32 %v60, %v62
    %v65 = vadd.f32 %v61, %v63
    %66 = vst [vmem:[#allocation8] sm:$0xff] %v64
    %67 = vst [vmem:[#allocation8 + $0x8] sm:$0xff] %v65
    // Predicated region
    $region26: #{tpu_custom_call.1} parent=1 // pred_check
      _
    $region27: #{tpu_custom_call.1} parent=1 // pred_check_branch
      %69 = sbr.rel (0) target = $region29
    $region28: #{tpu_custom_call.1} parent=1 // pred_region
      %71 = vsyncadd [#allocation4], 0
      %s73 = sshll.u32 [#allocation8], 4
      %s74 = int_to_ptr.vmem [resolvable:$true] %s73
      %s75 = sshll.u32 %s3, 4
      %s76 = int_to_ptr.hbm [resolvable:$true] %s75
      %78 = dma.vmem_to_hbm [thread:$0]  %s74, 256, %s76, [#allocation4]
    $region29: #{tpu_custom_call.1} parent=1 // pred_fallthru
      _
    // Predicated region
    $region30: #{tpu_custom_call.1} parent=1 // pred_check
      _
    $region31: #{tpu_custom_call.1} parent=1 // pred_check_branch
      %80 = sbr.rel (0) target = $region33
    $region32: #{tpu_custom_call.1} parent=1 // pred_region
      %82 = dma.done [#allocation4], 256
    $region33: #{tpu_custom_call.1} parent=1 // pred_fallthru
      _
    %83 = vsyncpa [#allocation3], 1
    %84 = vsyncpa [#allocation6], 1
    %85 = vsyncpa [#allocation4], 1

</llo_original>
